<compile_context>
chip_gen: v7x
topology: tpu7x:2x2x1
jax: 0.10.0
libtpu: 0.0.40
codegen_flags: <defaults>
</compile_context>

<pallas_src>
import functools

import numpy as np

import jax
import jax.numpy as jnp
from jax import lax
from jax.experimental import pallas as pl
from jax.experimental.pallas import tpu as pltpu


def _round_up(x, m):
    return ((x + m - 1) // m) * m


def _plan_tiling(N, H, W, inter_budget_bytes=8 << 20):
    """Pick pixel-tile size TP (multiple of 128), grid extent and VMEM limit."""
    mxu_over_y = H >= W          # contract the larger dim on the MXU
    Dm = H if mxu_over_y else W  # MXU contraction dim
    Dv = W if mxu_over_y else H  # VPU multiply + sublane-reduce dim
    HW = H * W

    # Approx f32 intermediate bytes per output pixel in the kernel body:
    #   MXU hat-mask build ~3*Dm, rows ~Dv, VPU hat-mask build + product ~4*Dv,
    #   plus a handful of (1, P) vectors.
    per_pixel = (3 * Dm + 5 * Dv + 8) * 4
    tp = max(128, (inter_budget_bytes // per_pixel) // 128 * 128)
    tp = min(tp, _round_up(HW, 128))

    # v7x megacore: expose at least 2 parallel grid steps when possible.
    if N == 1 and tp >= HW and HW > 128:
        tp = max(128, _round_up(pl.cdiv(HW, 2), 128))

    num_t = pl.cdiv(HW, tp)
    hwp = num_t * tp

    # VMEM estimate: body intermediates + double-buffered image/flow/grid/out.
    est = (per_pixel * tp          # intermediates
           + 2 * Dv * Dm * 4       # image block (x2 buffers)
           + 2 * 2 * tp * 4        # flow block (x2 buffers)
           + 2 * 2 * tp * 4        # base-grid block (x2 buffers)
           + 2 * tp * 4)           # output block (x2 buffers)
    vmem_limit = int(min(64 << 20, max(32 << 20, est + (8 << 20))))
    return mxu_over_y, Dm, Dv, tp, num_t, hwp, vmem_limit


def _warp_kernel(img_ref, flow_ref, base_ref, out_ref, *,
                 H, W, TP, mxu_over_y, mxu_dtype):
    """One batch image, TP flattened output pixels (lane-major)."""
    f32 = jnp.float32

    img2d = img_ref[0, 0, :, :]                      # (Dv, Dm)
    fx = flow_ref[:, 0, :].astype(f32)               # (1, TP) x-displacement
    fy = flow_ref[:, 1, :].astype(f32)               # (1, TP) y-displacement
    base = base_ref[...]                             # (2, TP) identity grid
    gx = base[0:1, :]                                 # (1, TP)
    gy = base[1:2, :]                                 # (1, TP)

    # align_corners=True normalize/un-normalize round-trips exactly;
    # padding_mode='border' => clamp the sample coordinates.
    ix = jnp.clip(gx + fx, 0.0, W - 1.0)
    iy = jnp.clip(gy + fy, 0.0, H - 1.0)

    cm, cv = (iy, ix) if mxu_over_y else (ix, iy)
    Dv, Dm = img2d.shape

    # Stage 1 (MXU): gather along Dm with bilinear 'hat' weights.
    #   hat_m[m, p] = max(0, 1 - |m - cm[p]|)   == the exact (1-w, w) pair.
    rM = lax.broadcasted_iota(jnp.int32, (Dm, TP), 0).astype(f32)
    hat_m = jnp.maximum(1.0 - jnp.abs(rM - cm), 0.0)                 # (Dm, TP)
    rows = jnp.dot(img2d.astype(mxu_dtype), hat_m.astype(mxu_dtype),
                   preferred_element_type=f32)                       # (Dv, TP)

    # Stage 2 (VPU + XLU): hat weights along Dv, multiply, sublane reduce.
    cV = lax.broadcasted_iota(jnp.int32, (Dv, TP), 0).astype(f32)
    hat_v = jnp.maximum(1.0 - jnp.abs(cV - cv), 0.0)                 # (Dv, TP)
    out = jnp.sum(rows * hat_v, axis=0, keepdims=True)               # (1, TP)

    out_ref[0, :, :] = out.astype(out_ref.dtype)                     # lane-dense


@functools.partial(jax.jit, static_argnames=("mxu_dtype",))
def spatial_transformer(input_image, flow, mxu_dtype=jnp.float32):
    """Pallas equivalent of SpatialTransformer(dim=2).forward(input_image, flow)."""
    N, C, H, W = input_image.shape
    assert C == 1 and flow.shape == (N, 2, H, W)

    mxu_over_y, Dm, Dv, TP, num_t, HWp, vmem_limit = _plan_tiling(N, H, W)
    HW = H * W

    # Host-side layout plumbing (cheap XLA reshapes/transposes):
    #  - image oriented so the MXU contraction dim is last (no in-kernel transpose),
    #  - flow flattened + padded so pixels are lane-major in 128-multiple tiles,
    #  - identity grid precomputed (no vector int div/mod in the kernel),
    #  - output produced lane-dense as (N, 1, HWp), sliced/reshaped back.
    if mxu_over_y:
        img2d = jnp.swapaxes(input_image, 2, 3)       # (N, 1, W, H): contract H
    else:
        img2d = input_image                           # (N, 1, H, W): contract W

    flow_flat = flow.reshape(N, 2, HW)
    if HWp != HW:
        flow_flat = jnp.pad(flow_flat, ((0, 0), (0, 0), (0, HWp - HW)))

    pid = jnp.arange(HWp, dtype=jnp.int32)
    base_grid = jnp.stack([pid % W, pid // W], axis=0).astype(jnp.float32)  # (2, HWp)

    kernel = functools.partial(_warp_kernel, H=H, W=W, TP=TP,
                               mxu_over_y=mxu_over_y, mxu_dtype=mxu_dtype)
    out_flat = pl.pallas_call(
        kernel,
        out_shape=jax.ShapeDtypeStruct((N, 1, HWp), input_image.dtype),
        grid=(N, num_t),
        in_specs=[
            pl.BlockSpec((1, 1, Dv, Dm), lambda n, t: (n, 0, 0, 0)),
            pl.BlockSpec((1, 2, TP), lambda n, t: (n, 0, t)),
            pl.BlockSpec((2, TP), lambda n, t: (0, t)),
        ],
        out_specs=pl.BlockSpec((1, 1, TP), lambda n, t: (n, 0, t)),
        compiler_params=pltpu.CompilerParams(
            dimension_semantics=("parallel", "parallel"),
            vmem_limit_bytes=vmem_limit),
    )(img2d, flow_flat, base_grid)

    return out_flat[:, :, :HW].reshape(N, 1, H, W)


def _reference_warp(input_image, flow):
    """Pure-JAX reference of the torch semantics (for self-check)."""
    N, _, H, W = input_image.shape
    f32 = jnp.float32
    gy, gx = jnp.meshgrid(jnp.arange(H, dtype=f32), jnp.arange(W, dtype=f32),
                          indexing="ij")

    def one(img2d, fx, fy):
        xn = (gx + fx) * (2.0 / (W - 1.0)) - 1.0
        yn = (gy + fy) * (2.0 / (H - 1.0)) - 1.0
        ix = jnp.clip((xn + 1.0) * 0.5 * (W - 1.0), 0.0, W - 1.0)
        iy = jnp.clip((yn + 1.0) * 0.5 * (H - 1.0), 0.0, H - 1.0)
        x0f, y0f = jnp.floor(ix), jnp.floor(iy)
        wx, wy = ix - x0f, iy - y0f
        x0 = jnp.clip(x0f.astype(jnp.int32), 0, W - 1)
        y0 = jnp.clip(y0f.astype(jnp.int32), 0, H - 1)
        x1 = jnp.clip(x0 + 1, 0, W - 1)
        y1 = jnp.clip(y0 + 1, 0, H - 1)
        return ((1 - wx) * (1 - wy) * img2d[y0, x0]
                + wx * (1 - wy) * img2d[y0, x1]
                + (1 - wx) * wy * img2d[y1, x0]
                + wx * wy * img2d[y1, x1])

    out = jax.vmap(one)(input_image[:, 0], flow[:, 0], flow[:, 1])
    return out[:, None]


if __name__ == "__main__":
    key = jax.random.PRNGKey(0)
    k_img, k_flow = jax.random.split(key)

    N, H, W = 2, 16, 16
    input_image = jax.random.uniform(k_img, (N, 1, H, W), dtype=jnp.float32)
    flow = 3.0 * jax.random.normal(k_flow, (N, 2, H, W), dtype=jnp.float32)

    out = jax.block_until_ready(spatial_transformer(input_image, flow))
    assert out.shape == (N, 1, H, W)

    ref = jax.block_until_ready(_reference_warp(input_image, flow))
    np.testing.assert_allclose(np.asarray(out), np.asarray(ref),
                               rtol=1e-5, atol=1e-5)
    print("KERNEL_OK")
</pallas_src>

<mosaic_0001>
module attributes {stable_mosaic.version = 11 : i64} {
  func.func @_warp_kernel(%arg0: i32, %arg1: i32, %arg2: memref<1x1x16x16xf32, #tpu.memory_space<vmem>>, %arg3: memref<1x2x256xf32, #tpu.memory_space<vmem>>, %arg4: memref<2x256xf32, #tpu.memory_space<vmem>>, %arg5: memref<1x1x256xf32, #tpu.memory_space<vmem>>) attributes {dimension_semantics = [#tpu.dimension_semantics<parallel>, #tpu.dimension_semantics<parallel>], iteration_bounds = array<i64: 2, 1>, scalar_prefetch = 0 : i64, scratch_operands = 0 : i64, tpu.core_type = #tpu.core_type<tc>, window_params = [{transform_indices = @transform_0, window_bounds = array<i64: 1, 1, 16, 16>}, {transform_indices = @transform_1, window_bounds = array<i64: 1, 2, 256>}, {transform_indices = @transform_2, window_bounds = array<i64: 2, 256>}, {transform_indices = @transform_3, window_bounds = array<i64: 1, 1, 256>}]} {
    %c0 = arith.constant 0 : index
    %c0_0 = arith.constant 0 : index
    %c0_1 = arith.constant 0 : index
    %c0_2 = arith.constant 0 : index
    %0 = vector.load %arg2[%c0, %c0_0, %c0_1, %c0_2] : memref<1x1x16x16xf32, #tpu.memory_space<vmem>>, vector<1x1x16x16xf32>
    %1 = vector.shape_cast %0 : vector<1x1x16x16xf32> to vector<16x16xf32>
    %c0_3 = arith.constant 0 : index
    %c0_4 = arith.constant 0 : index
    %c0_5 = arith.constant 0 : index
    %2 = vector.load %arg3[%c0_3, %c0_4, %c0_5] : memref<1x2x256xf32, #tpu.memory_space<vmem>>, vector<1x1x256xf32>
    %3 = vector.shape_cast %2 : vector<1x1x256xf32> to vector<1x256xf32>
    %c0_6 = arith.constant 0 : index
    %c1 = arith.constant 1 : index
    %c0_7 = arith.constant 0 : index
    %4 = vector.load %arg3[%c0_6, %c1, %c0_7] : memref<1x2x256xf32, #tpu.memory_space<vmem>>, vector<1x1x256xf32>
    %5 = vector.shape_cast %4 : vector<1x1x256xf32> to vector<1x256xf32>
    %c0_8 = arith.constant 0 : index
    %c0_9 = arith.constant 0 : index
    %6 = vector.load %arg4[%c0_8, %c0_9] : memref<2x256xf32, #tpu.memory_space<vmem>>, vector<2x256xf32>
    %7 = vector.extract_strided_slice %6 {offsets = [0, 0], sizes = [1, 256], strides = [1, 1]} : vector<2x256xf32> to vector<1x256xf32>
    %8 = vector.extract_strided_slice %6 {offsets = [1, 0], sizes = [1, 256], strides = [1, 1]} : vector<2x256xf32> to vector<1x256xf32>
    %9 = arith.addf %7, %3 : vector<1x256xf32>
    %cst = arith.constant 0.000000e+00 : f32
    %cst_10 = arith.constant 1.500000e+01 : f32
    %10 = vector.broadcast %cst : f32 to vector<1x256xf32>
    %11 = arith.maximumf %10, %9 : vector<1x256xf32>
    %12 = vector.broadcast %cst_10 : f32 to vector<1x256xf32>
    %13 = arith.minimumf %12, %11 : vector<1x256xf32>
    %14 = arith.addf %8, %5 : vector<1x256xf32>
    %cst_11 = arith.constant 0.000000e+00 : f32
    %cst_12 = arith.constant 1.500000e+01 : f32
    %15 = vector.broadcast %cst_11 : f32 to vector<1x256xf32>
    %16 = arith.maximumf %15, %14 : vector<1x256xf32>
    %17 = vector.broadcast %cst_12 : f32 to vector<1x256xf32>
    %18 = arith.minimumf %17, %16 : vector<1x256xf32>
    %19 = tpu.iota {dimensions = array<i32: 0>} : vector<16x256xi32>
    %20 = arith.sitofp %19 : vector<16x256xi32> to vector<16x256xf32>
    %21 = vector.broadcast %18 : vector<1x256xf32> to vector<16x256xf32>
    %22 = arith.subf %20, %21 : vector<16x256xf32>
    %23 = math.absf %22 : vector<16x256xf32>
    %cst_13 = arith.constant 1.000000e+00 : f32
    %24 = vector.broadcast %cst_13 : f32 to vector<16x256xf32>
    %25 = arith.subf %24, %23 : vector<16x256xf32>
    %cst_14 = arith.constant 0.000000e+00 : f32
    %26 = vector.broadcast %cst_14 : f32 to vector<16x256xf32>
    %27 = arith.maximumf %25, %26 : vector<16x256xf32>
    %cst_15 = arith.constant dense<0.000000e+00> : vector<16x256xf32>
    %28 = tpu.matmul %1, %27, %cst_15 {dimension_numbers = #tpu.dot_dimension_numbers<[1], [0], [0], [1], [0, 0, 1, 1], [], []>} : vector<16x16xf32>, vector<16x256xf32>, vector<16x256xf32> -> vector<16x256xf32>
    %29 = tpu.iota {dimensions = array<i32: 0>} : vector<16x256xi32>
    %30 = arith.sitofp %29 : vector<16x256xi32> to vector<16x256xf32>
    %31 = vector.broadcast %13 : vector<1x256xf32> to vector<16x256xf32>
    %32 = arith.subf %30, %31 : vector<16x256xf32>
    %33 = math.absf %32 : vector<16x256xf32>
    %cst_16 = arith.constant 1.000000e+00 : f32
    %34 = vector.broadcast %cst_16 : f32 to vector<16x256xf32>
    %35 = arith.subf %34, %33 : vector<16x256xf32>
    %cst_17 = arith.constant 0.000000e+00 : f32
    %36 = vector.broadcast %cst_17 : f32 to vector<16x256xf32>
    %37 = arith.maximumf %35, %36 : vector<16x256xf32>
    %38 = arith.mulf %28, %37 : vector<16x256xf32>
    %cst_18 = arith.constant dense<0.000000e+00> : vector<256xf32>
    %39 = vector.multi_reduction <add>, %38, %cst_18 [0] : vector<16x256xf32> to vector<256xf32>
    %40 = vector.shape_cast %39 : vector<256xf32> to vector<1x256xf32>
    %c0_19 = arith.constant 0 : index
    %c0_20 = arith.constant 0 : index
    %c0_21 = arith.constant 0 : index
    %41 = vector.load %arg5[%c0_19, %c0_20, %c0_21] : memref<1x1x256xf32, #tpu.memory_space<vmem>>, vector<1x1x256xf32>
    %42 = vector.shape_cast %41 : vector<1x1x256xf32> to vector<1x256xf32>
    %43 = vector.shape_cast %40 : vector<1x256xf32> to vector<1x1x256xf32>
    tpu.vector_store %arg5[%c0_19, %c0_20, %c0_21], %43 {strides = array<i32>} : memref<1x1x256xf32, #tpu.memory_space<vmem>>, vector<1x1x256xf32>,
    return
  }
  func.func @transform_0(%arg0: i32, %arg1: i32) -> (i32, i32, i32, i32) {
    %c0_i32 = arith.constant 0 : i32
    %c0_i32_0 = arith.constant 0 : i32
    %c0_i32_1 = arith.constant 0 : i32
    %c0_i32_2 = arith.constant 0 : i32
    return %arg0, %c0_i32, %c0_i32_0, %c0_i32_1 : i32, i32, i32, i32
  }
  func.func @transform_1(%arg0: i32, %arg1: i32) -> (i32, i32, i32) {
    %c0_i32 = arith.constant 0 : i32
    %c0_i32_0 = arith.constant 0 : i32
    return %arg0, %c0_i32, %arg1 : i32, i32, i32
  }
  func.func @transform_2(%arg0: i32, %arg1: i32) -> (i32, i32) {
    %c0_i32 = arith.constant 0 : i32
    %c0_i32_0 = arith.constant 0 : i32
    return %c0_i32, %arg1 : i32, i32
  }
  func.func @transform_3(%arg0: i32, %arg1: i32) -> (i32, i32, i32) {
    %c0_i32 = arith.constant 0 : i32
    %c0_i32_0 = arith.constant 0 : i32
    return %arg0, %c0_i32, %arg1 : i32, i32, i32
  }
}

</mosaic_0001>

<llo_original>
// kernel: spatial_transformer.1
$region0: #{spatial_transformer.1}
  #allocation0 [shape = 'u32[]', space=smem, size = 0x4, offset = 0x4, fixed_abs, tag = 'smem constant byte address 0x4 - core index']
  #allocation1 [shape = 'u32[144,128]{1,0:T(1,128)}', space=vmem, size = 0x12000, scoped, tag = 'internal scratch']
  %s0 = inlined_call_operand.vmem [shape: f32[2,1,16,16], index: 0, kind: input, shape index: {}]
  %s1 = inlined_call_operand.vmem [shape: f32[2,2,256], index: 1, kind: input, shape index: {}]
  %s2 = inlined_call_operand.vmem [shape: f32[2,256], index: 2, kind: input, shape index: {}]
  %s3 = inlined_call_operand.vmem [shape: f32[2,1,256], index: 3, kind: output, shape index: {}]
  %s4 = sld [smem:[#allocation0]]
  $region45: #{spatial_transformer.1} parent=0
    _
  %s6 = ssub.s32 1, %s4
  %s7 = scalar_select 0, %s6, %s4
  loop: start=0, step=1, limit=4
  $region2: #{spatial_transformer.1} parent=0 // loop_pre_header
    _
  $region3: #{spatial_transformer.1} parent=0 // loop_header
    %s9 = sphi 0, %s13
    %p10 = scmp.ge.s32.totalorder %s9, 4
    %s16 = sphi 0, %s28
    %s17 = sphi 0, %s24
    %s18 = sphi 0, %s16
    %s19 = sphi 0, %s17
    %s20 = sphi 0, %s18
    %s21 = sphi 0, %s19
    %s31 = sphi 0, %s33
    %s34 = sphi 0, %s31
    %s35 = sphi 0, %s34
    %s51 = sphi 0, %s35
    %s59 = sphi 0, %s61
    %s62 = sphi 0, %s59
    %s63 = sphi 0, %s62
    %s79 = sphi 0, %s63
    %s85 = sphi 0, %s87
    %s88 = sphi 0, %s85
    %s89 = sphi 0, %s88
    %s105 = sphi 0, %s89
    %s113 = sphi 0, %s115
    %s116 = sphi 0, %s113
    %s117 = sphi 0, %s116
    %s133 = sphi 0, %s117
  $region4: #{spatial_transformer.1} parent=0 // loop_header_branch
    %12 = sbr.rel (%p10) target = $region8
  $region5: #{spatial_transformer.1} parent=0 // loop_body
    %s14 = ssub.s32 %s9, 1
    %s15 = ssub.s32 %s9, 2
    %s22 = sadd.s32 1, %s17
    %p23 = scmp.ge.s32.totalorder %s22, 1
    %s24 = scalar_select %p23, 0, %s22
    %s25 = sadd.s32 1, %s16
    %s26 = scalar_select %p23, %s25, %s16
    %p27 = scmp.ge.s32.totalorder %s26, 2
    %s28 = scalar_select %p27, 0, %s26
    %s29 = ssub.s32 %s16, %s28
    %p30 = scmp.eq.s32.totalorder %s29, 0
    %s32 = sadd.s32 %s31, 1
    %s33 = scalar_select %p30, %s31, %s32
    %p36 = pneg %p30
    %p37 = scmp.eq.s32.totalorder %s9, 1
    %p38 = por %p36, %p37
    %p39 = scmp.ne.s32.totalorder %s31, %s34
    %p40 = scmp.eq.s32.totalorder %s9, 0
    %p41 = por %p39, %p40
    %p42 = scmp.ne.s32.totalorder %s31, %s34
    %p43 = scmp.eq.s32.totalorder %s14, 1
    %p44 = por %p42, %p43
    %p45 = scmp.ne.s32.totalorder %s34, %s35
    %p46 = scmp.eq.s32.totalorder %s14, 0
    %p47 = por %p45, %p46
    %p48 = scmp.ne.s32.totalorder %s34, %s35
    %p49 = scmp.eq.s32.totalorder %s15, 1
    %p50 = por %p48, %p49
    %p52 = scmp.ne.s32.totalorder %s35, %s51
    %p53 = scmp.eq.s32.totalorder %s15, 0
    %p54 = por %p52, %p53
    %s55 = ssub.s32 %s16, %s28
    %s56 = ssub.s32 %s17, %s24
    %s57 = sor.u32 %s55, %s56
    %p58 = scmp.eq.s32.totalorder %s57, 0
    %s60 = sadd.s32 %s59, 1
    %s61 = scalar_select %p58, %s59, %s60
    %p64 = pneg %p58
    %p65 = scmp.eq.s32.totalorder %s9, 1
    %p66 = por %p64, %p65
    %p67 = scmp.ne.s32.totalorder %s59, %s62
    %p68 = scmp.eq.s32.totalorder %s9, 0
    %p69 = por %p67, %p68
    %p70 = scmp.ne.s32.totalorder %s59, %s62
    %p71 = scmp.eq.s32.totalorder %s14, 1
    %p72 = por %p70, %p71
    %p73 = scmp.ne.s32.totalorder %s62, %s63
    %p74 = scmp.eq.s32.totalorder %s14, 0
    %p75 = por %p73, %p74
    %p76 = scmp.ne.s32.totalorder %s62, %s63
    %p77 = scmp.eq.s32.totalorder %s15, 1
    %p78 = por %p76, %p77
    %p80 = scmp.ne.s32.totalorder %s63, %s79
    %p81 = scmp.eq.s32.totalorder %s15, 0
    %p82 = por %p80, %p81
    %s83 = ssub.s32 %s17, %s24
    %p84 = scmp.eq.s32.totalorder %s83, 0
    %s86 = sadd.s32 %s85, 1
    %s87 = scalar_select %p84, %s85, %s86
    %p90 = pneg %p84
    %p91 = scmp.eq.s32.totalorder %s9, 1
    %p92 = por %p90, %p91
    %p93 = scmp.ne.s32.totalorder %s85, %s88
    %p94 = scmp.eq.s32.totalorder %s9, 0
    %p95 = por %p93, %p94
    %p96 = scmp.ne.s32.totalorder %s85, %s88
    %p97 = scmp.eq.s32.totalorder %s14, 1
    %p98 = por %p96, %p97
    %p99 = scmp.ne.s32.totalorder %s88, %s89
    %p100 = scmp.eq.s32.totalorder %s14, 0
    %p101 = por %p99, %p100
    %p102 = scmp.ne.s32.totalorder %s88, %s89
    %p103 = scmp.eq.s32.totalorder %s15, 1
    %p104 = por %p102, %p103
    %p106 = scmp.ne.s32.totalorder %s89, %s105
    %p107 = scmp.eq.s32.totalorder %s15, 0
    %p108 = por %p106, %p107
    %s109 = ssub.s32 %s16, %s28
    %s110 = ssub.s32 %s17, %s24
    %s111 = sor.u32 %s109, %s110
    %p112 = scmp.eq.s32.totalorder %s111, 0
    %s114 = sadd.s32 %s113, 1
    %s115 = scalar_select %p112, %s113, %s114
    %p118 = pneg %p112
    %p119 = scmp.eq.s32.totalorder %s9, 1
    %p120 = por %p118, %p119
    %p121 = scmp.ne.s32.totalorder %s113, %s116
    %p122 = scmp.eq.s32.totalorder %s9, 0
    %p123 = por %p121, %p122
    %p124 = scmp.ne.s32.totalorder %s113, %s116
    %p125 = scmp.eq.s32.totalorder %s14, 1
    %p126 = por %p124, %p125
    %p127 = scmp.ne.s32.totalorder %s116, %s117
    %p128 = scmp.eq.s32.totalorder %s14, 0
    %p129 = por %p127, %p128
    %p130 = scmp.ne.s32.totalorder %s116, %s117
    %p131 = scmp.eq.s32.totalorder %s15, 1
    %p132 = por %p130, %p131
    %p134 = scmp.ne.s32.totalorder %s117, %s133
    %p135 = scmp.eq.s32.totalorder %s15, 0
    %p136 = por %p134, %p135
    %p137 = scmp.le.s32.totalorder 1, %s9
    %p138 = scmp.lt.s32.totalorder %s9, 3
    %p139 = pnand %p137, %p138
    %p140 = pneg %p139
    // Predicated region
    $region9: #{spatial_transformer.1} parent=5 // pred_check
      _
    $region10: #{spatial_transformer.1} parent=5 // pred_check_branch
      %142 = sbr.rel (%p139) target = $region12
    $region11: #{spatial_transformer.1} parent=5 // pred_region
      %s143 = ssub.s32 %s9, 1
      // Predicated region
      $region13: #{spatial_transformer.1} parent=11 // pred_check
        %p144 = pneg %p101
      $region14: #{spatial_transformer.1} parent=11 // pred_check_branch
        %146 = sbr.rel (%p144) target = $region16
      $region15: #{spatial_transformer.1} parent=11 // pred_region
        %s147 = smul.u32 2, %s19
        %p148 = scmp.lt.s32.totalorder %s147, 1
        %s149 = scalar_select %p148, %s147, 1
        %s150 = smul.addr %s149, 2
        %s151 = scalar_lea.vmem %s2, %s150
        %s152 = smul.u32 2, %s19
      $region16: #{spatial_transformer.1} parent=11 // pred_fallthru
        _
    $region12: #{spatial_transformer.1} parent=5 // pred_fallthru
      _
    %p153 = scmp.lt.s32.totalorder %s9, 2
    // Predicated region
    $region17: #{spatial_transformer.1} parent=5 // pred_check
      %p154 = pneg %p153
    $region18: #{spatial_transformer.1} parent=5 // pred_check_branch
      %156 = sbr.rel (%p154) target = $region20
    $region19: #{spatial_transformer.1} parent=5 // pred_region
      // Predicated region
      $region21: #{spatial_transformer.1} parent=19 // pred_check
        %p157 = pneg %p41
      $region22: #{spatial_transformer.1} parent=19 // pred_check_branch
        %159 = sbr.rel (%p157) target = $region24
      $region23: #{spatial_transformer.1} parent=19 // pred_region
        %p160 = scmp.lt.s32.totalorder %s16, 1
        %s161 = scalar_select %p160, %s16, 1
        %s162 = smul.addr %s161, 2
        %s163 = smul.addr %s162, 8
        %s164 = scalar_lea.vmem %s0, %s163
      $region24: #{spatial_transformer.1} parent=19 // pred_fallthru
        _
      // Predicated region
      $region25: #{spatial_transformer.1} parent=19 // pred_check
        %p165 = pneg %p69
      $region26: #{spatial_transformer.1} parent=19 // pred_check_branch
        %167 = sbr.rel (%p165) target = $region28
      $region27: #{spatial_transformer.1} parent=19 // pred_region
        %s168 = smul.u32 2, %s17
        %p169 = scmp.lt.s32.totalorder %s16, 1
        %s170 = scalar_select %p169, %s16, 1
        %p171 = scmp.lt.s32.totalorder %s168, 1
        %s172 = scalar_select %p171, %s168, 1
        %s173 = smul.addr %s170, 2
        %s174 = sadd.s32 %s172, %s173
        %s175 = smul.addr %s174, 2
        %s176 = scalar_lea.vmem %s1, %s175
        %s177 = smul.u32 2, %s17
      $region28: #{spatial_transformer.1} parent=19 // pred_fallthru
        _
    $region20: #{spatial_transformer.1} parent=5 // pred_fallthru
      _
    %p178 = scmp.le.s32.totalorder 1, %s9
    %p179 = scmp.lt.s32.totalorder %s9, 3
    %p180 = pnand %p178, %p179
    %p181 = pneg %p180
    // Predicated region
    $region29: #{spatial_transformer.1} parent=5 // pred_check
      _
    $region30: #{spatial_transformer.1} parent=5 // pred_check_branch
      %183 = sbr.rel (%p180) target = $region32
    $region31: #{spatial_transformer.1} parent=5 // pred_region
      %s184 = ssub.s32 %s9, 1
      %p185 = scmp.lt.s32.totalorder %s18, 1
      %s186 = scalar_select %p185, %s18, 1
      %s187 = smul.addr %s186, 2
      %s188 = smul.addr %s187, 8
      %s189 = scalar_lea.vmem %s0, %s188
      %p190 = pneg %p47
      %p191 = pneg %p44
      %s192 = smul.u32 2, %s19
      %p193 = scmp.lt.s32.totalorder %s18, 1
      %s194 = scalar_select %p193, %s18, 1
      %p195 = scmp.lt.s32.totalorder %s192, 1
      %s196 = scalar_select %p195, %s192, 1
      %s197 = smul.addr %s194, 2
      %s198 = sadd.s32 %s196, %s197
      %s199 = smul.addr %s198, 2
      %s200 = scalar_lea.vmem %s1, %s199
      %p201 = pneg %p75
      %p202 = pneg %p72
      %s203 = smul.u32 2, %s19
      %p204 = scmp.lt.s32.totalorder %s203, 1
      %s205 = scalar_select %p204, %s203, 1
      %s206 = smul.addr %s205, 2
      %s207 = scalar_lea.vmem %s2, %s206
      %p208 = pneg %p101
      %p209 = pneg %p98
      %p210 = pneg %p129
      %p211 = pneg %p126
      %s212 = smul.u32 2, %s19
      %p213 = scmp.lt.s32.totalorder %s18, 1
      %s214 = scalar_select %p213, %s18, 1
      %p215 = scmp.lt.s32.totalorder %s212, 1
      %s216 = scalar_select %p215, %s212, 1
      %s217 = smul.addr %s214, 2
      %s218 = sadd.s32 %s216, %s217
      %s219 = scalar_lea.vmem %s3, %s218
      %p220 = scmp.lt.s32.totalorder %s18, 1
      %s221 = scalar_select %p220, %s18, 1
      %s222 = smul.addr %s221, 2
      %s223 = smul.addr %s222, 8
      %s224 = scalar_lea.vmem %s0, %s223
      %s225 = smul.u32 2, %s19
      %p226 = scmp.lt.s32.totalorder %s18, 1
      %s227 = scalar_select %p226, %s18, 1
      %p228 = scmp.lt.s32.totalorder %s225, 1
      %s229 = scalar_select %p228, %s225, 1
      %s230 = smul.addr %s227, 2
      %s231 = sadd.s32 %s229, %s230
      %s232 = smul.addr %s231, 2
      %s233 = scalar_lea.vmem %s1, %s232
      %s234 = smul.u32 2, %s19
      %s235 = smul.u32 2, %s19
      %p236 = scmp.lt.s32.totalorder %s235, 1
      %s237 = scalar_select %p236, %s235, 1
      %s238 = smul.addr %s237, 2
      %s239 = scalar_lea.vmem %s2, %s238
      %s240 = smul.u32 2, %s19
      %s241 = smul.u32 2, %s19
      %p242 = scmp.lt.s32.totalorder %s18, 1
      %s243 = scalar_select %p242, %s18, 1
      %p244 = scmp.lt.s32.totalorder %s241, 1
      %s245 = scalar_select %p244, %s241, 1
      %s246 = smul.addr %s243, 2
      %s247 = sadd.s32 %s245, %s246
      %s248 = scalar_lea.vmem %s3, %s247
      %s249 = smul.u32 2, %s19
      %v250 = vld [vmem:[%s224] sm:$0xff]
      %v251 = vld [vmem:[%s224 + $0x8] sm:$0xff]
      %v252 = vld [vmem:[%s233] ss:$2 sm:$0x3]
      %s253 = scalar_lea.vmem %s233, 1
      %v254 = vld [vmem:[%s253] ss:$2 sm:$0x3]
      %v255 = vld [vmem:[%s239] sm:$0xf]
      %v258 = vunpack.c.l.s4 857870592
      %v259 = vunpack.c.0.s8 %v258
      %v260 = vlaneseq
      %v261 = vshrl.u32 %v260, 7
      %v262 = vsub.s32 %v259, %v261
      %v263 = vrot.slane %v252, %v262
      %v265 = vadd.f32 %v255, %v263
      %v266 = vmax.f32 %v265, 0.0
      %v267 = vmin.f32 %v266, 15.0
      %v270 = vunpack.c.l.s4 857870592
      %v271 = vunpack.c.0.s8 %v270
      %v272 = vlaneseq
      %v273 = vshrl.u32 %v272, 7
      %v274 = vsub.s32 %v271, %v273
      %v275 = vrot.slane %v254, %v274
      %v277 = vadd.f32 %v255, %v275
      %v278 = vmax.f32 %v277, 0.0
      %v279 = vmin.f32 %v278, 15.0
      %v280 = vlaneseq
      %v281 = vshrl.u32 %v280, 7
      %v282 = vadd.s32 %v281, 8
      %v283 = vcvt.s32.f32 %v281
      %v284 = vcvt.s32.f32 %v282
      %v286 = vlaneseq
      %v287 = vshrl.u32 %v286, 7
      %v288 = vsub.s32 1, %v287
      %v289 = vrot.slane %v279, %v288
      %v290 = vlaneseq
      %v291 = vshrl.u32 %v290, 7
      %v292 = vsub.s32 3, %v291
      %v293 = vrot.slane %v279, %v292
      %v296 = vlaneseq
      %v297 = vshrl.u32 %v296, 7
      %v298 = vsub.s32 1, %v297
      %v299 = vrot.slane %v289, %v298
      %v300 = vlaneseq
      %v301 = vshrl.u32 %v300, 7
      %v302 = vsub.s32 1, %v301
      %v303 = vrot.slane %v293, %v302
      %v304 = vsub.f32 %v283, %v299
      %v305 = vsub.f32 %v283, %v303
      %v306 = vsub.f32 %v284, %v299
      %v307 = vsub.f32 %v284, %v303
      %v308 = vand.u32 2147483647, %v304
      %v309 = vand.u32 2147483647, %v305
      %v310 = vand.u32 2147483647, %v306
      %v311 = vand.u32 2147483647, %v307
      %v312 = vsub.f32 1.0, %v308
      %v313 = vsub.f32 1.0, %v309
      %v314 = vsub.f32 1.0, %v310
      %v315 = vsub.f32 1.0, %v311
      %v316 = vmax.f32 %v312, 0.0
      %v317 = vmax.f32 %v313, 0.0
      %v318 = vmax.f32 %v314, 0.0
      %v319 = vmax.f32 %v315, 0.0
      %vm320 = vcmask 130048
      %v322 = vsel %vm320, %v250, 0
      %v325 = vsel %vm320, %v251, 0
      %327 = vmatprep.subr.mxu0 %v317
      %328 = vmatpush1.msra.mxu0 %v316
      %329 = vmatprep.subr.mxu0 %v319
      %330 = vmatpush1.msra.mxu0 %v318
      %331 = vmatprep.subr.mxu0 0.0
      %332 = vmatpush1.msra.mxu0 0.0
      %333 = vmatprep.subr.mxu0 0.0
      %334 = vmatpush1.msra.mxu0 0.0
      %335 = vmatprep.subr.mxu0 0.0
      %336 = vmatpush1.msra.mxu0 0.0
      %337 = vmatprep.subr.mxu0 0.0
      %338 = vmatpush1.msra.mxu0 0.0
      %339 = vmatprep.subr.mxu0 0.0
      %340 = vmatpush1.msra.mxu0 0.0
      %341 = vmatprep.subr.mxu0 0.0
      %342 = vmatpush1.msra.mxu0 0.0
      %343 = vmatprep.subr.mxu0 0.0
      %344 = vmatpush1.msra.mxu0 0.0
      %345 = vmatprep.subr.mxu0 0.0
      %346 = vmatpush1.msra.mxu0 0.0
      %347 = vmatprep.subr.mxu0 0.0
      %348 = vmatpush1.msra.mxu0 0.0
      %349 = vmatprep.subr.mxu0 0.0
      %350 = vmatpush1.msra.mxu0 0.0
      %351 = vmatprep.subr.mxu0 0.0
      %352 = vmatpush1.msra.mxu0 0.0
      %353 = vmatprep.subr.mxu0 0.0
      %354 = vmatpush1.msra.mxu0 0.0
      %355 = vmatprep.subr.mxu0 0.0
      %356 = vmatpush1.msra.mxu0 0.0
      %357 = vmatprep.subr.mxu0 0.0
      %358 = vmatpush1.msra.mxu0 0.0
      %359 = vmatprep.subr.mxu0 0.0
      %360 = vmatpush1.msra.mxu0 0.0
      %361 = vmatprep.subr.mxu0 0.0
      %362 = vmatpush1.msra.mxu0 0.0
      %363 = vmatprep.subr.mxu0 0.0
      %364 = vmatpush1.msra.mxu0 0.0
      %365 = vmatprep.subr.mxu0 0.0
      %366 = vmatpush1.msra.mxu0 0.0
      %367 = vmatprep.subr.mxu0 0.0
      %368 = vmatpush1.msra.mxu0 0.0
      %369 = vmatprep.subr.mxu0 0.0
      %370 = vmatpush1.msra.mxu0 0.0
      %371 = vmatprep.subr.mxu0 0.0
      %372 = vmatpush1.msra.mxu0 0.0
      %373 = vmatprep.subr.mxu0 0.0
      %374 = vmatpush1.msra.mxu0 0.0
      %375 = vmatprep.subr.mxu0 0.0
      %376 = vmatpush1.msra.mxu0 0.0
      %377 = vmatprep.subr.mxu0 0.0
      %378 = vmatpush1.msra.mxu0 0.0
      %379 = vmatprep.subr.mxu0 0.0
      %380 = vmatpush1.msra.mxu0 0.0
      %381 = vmatprep.subr.mxu0 0.0
      %382 = vmatpush1.msra.mxu0 0.0
      %383 = vmatprep.subr.mxu0 0.0
      %384 = vmatpush1.msra.mxu0 0.0
      %385 = vmatprep.subr.mxu0 0.0
      %386 = vmatpush1.msra.mxu0 0.0
      %387 = vmatprep.subr.mxu0 0.0
      %388 = vmatpush1.msra.mxu0 0.0
      %389 = vmatprep.subr.mxu0 0.0
      %390 = vmatpush1.msra.mxu0 0.0
      %391 = vmatprep.mubr.f32.mxu0 0.0
      %392 = vmatmul.mubr.f32.gmra.mrb[0].mxu0 %v322
      %v393 = vpop.f32.mrb[0].mxu0
      %v394 = vadd.f32 0.0, %v393
      %v395 = vpop.f32.mrb[0].mxu0
      %v396 = vadd.f32 0.0, %v395
      %397 = vmatprep.mubr.f32.mxu0 0.0
      %398 = vmatmul.mubr.f32.gmra.mrb[0].mxu0 %v325
      %v399 = vpop.f32.mrb[0].mxu0
      %v400 = vadd.f32 0.0, %v399
      %v401 = vpop.f32.mrb[0].mxu0
      %v402 = vadd.f32 0.0, %v401
      %403 = vdwg.mxu0
      %v405 = vlaneseq
      %v406 = vshrl.u32 %v405, 7
      %v407 = vsub.s32 0, %v406
      %v408 = vrot.slane %v267, %v407
      %v409 = vlaneseq
      %v410 = vshrl.u32 %v409, 7
      %v411 = vsub.s32 2, %v410
      %v412 = vrot.slane %v267, %v411
      %v415 = vlaneseq
      %v416 = vshrl.u32 %v415, 7
      %v417 = vsub.s32 0, %v416
      %v418 = vrot.slane %v408, %v417
      %v419 = vlaneseq
      %v420 = vshrl.u32 %v419, 7
      %v421 = vsub.s32 0, %v420
      %v422 = vrot.slane %v412, %v421
      %v423 = vsub.f32 %v283, %v418
      %v424 = vsub.f32 %v283, %v422
      %v425 = vsub.f32 %v284, %v418
      %v426 = vsub.f32 %v284, %v422
      %v427 = vand.u32 2147483647, %v423
      %v428 = vand.u32 2147483647, %v424
      %v429 = vand.u32 2147483647, %v425
      %v430 = vand.u32 2147483647, %v426
      %v431 = vsub.f32 1.0, %v427
      %v432 = vsub.f32 1.0, %v428
      %v433 = vsub.f32 1.0, %v429
      %v434 = vsub.f32 1.0, %v430
      %v435 = vmax.f32 %v431, 0.0
      %v436 = vmax.f32 %v432, 0.0
      %v437 = vmax.f32 %v433, 0.0
      %v438 = vmax.f32 %v434, 0.0
      %v439 = vmul.f32 %v394, %v435
      %v440 = vmul.f32 %v396, %v436
      %v441 = vmul.f32 %v400, %v437
      %v442 = vmul.f32 %v402, %v438
      %v443 = vadd.f32 %v439, %v441
      %v444 = vrot.slane %v443, 4
      %v445 = vadd.f32 %v443, %v444
      %v446 = vrot.slane %v445, 2
      %v447 = vadd.f32 %v445, %v446
      %v448 = vrot.slane %v447, 1
      %v449 = vadd.f32 %v447, %v448
      %v450 = vadd.f32 %v440, %v442
      %v451 = vrot.slane %v450, 4
      %v452 = vadd.f32 %v450, %v451
      %v453 = vrot.slane %v452, 2
      %v454 = vadd.f32 %v452, %v453
      %v455 = vrot.slane %v454, 1
      %v456 = vadd.f32 %v454, %v455
      %v459 = vcombine.low %v449, %v456
      %v461 = vunpack.c.l.s4 1966171168
      %v462 = vunpack.c.0.s8 %v461
      %v463 = vlaneseq
      %v464 = vshrl.u32 %v463, 7
      %v465 = vsub.s32 %v462, %v464
      %v466 = vrot.slane %v459, %v465
      %v468 = vunpack.c.l.s4 1966171168
      %v469 = vunpack.c.0.s8 %v468
      %v470 = vlaneseq
      %v471 = vshrl.u32 %v470, 7
      %v472 = vsub.s32 %v469, %v471
      %v473 = vrot.slane %v466, %v472
      %v475 = vlaneseq
      %vm476 = vcmp.ge.s32.totalorder %v475, 0
      %vm477 = vcmp.lt.s32.totalorder %v475, 256
      %vm478 = vmand %vm476, %vm477
      %479 = vst.msk [vmem:[%s248] sm:$0x3] %vm478, %v473
      %s480 = smul.u32 2, %s19
      %p481 = scmp.lt.s32.totalorder %s18, 1
      %s482 = scalar_select %p481, %s18, 1
      %p483 = scmp.lt.s32.totalorder %s480, 1
      %s484 = scalar_select %p483, %s480, 1
      %s485 = smul.addr %s482, 2
      %s486 = sadd.s32 %s484, %s485
      %s487 = scalar_lea.vmem %s3, %s486
      // Predicated region
      $region33: #{spatial_transformer.1} parent=31 // pred_check
        %p488 = pneg %p126
      $region34: #{spatial_transformer.1} parent=31 // pred_check_branch
        %490 = sbr.rel (%p488) target = $region36
      $region35: #{spatial_transformer.1} parent=31 // pred_region
        %s491 = smul.u32 2, %s19
      $region36: #{spatial_transformer.1} parent=31 // pred_fallthru
        _
    $region32: #{spatial_transformer.1} parent=5 // pred_fallthru
      _
    %p492 = scmp.le.s32.totalorder 2, %s9
    // Predicated region
    $region37: #{spatial_transformer.1} parent=5 // pred_check
      %p493 = pneg %p492
    $region38: #{spatial_transformer.1} parent=5 // pred_check_branch
      %495 = sbr.rel (%p493) target = $region40
    $region39: #{spatial_transformer.1} parent=5 // pred_region
      %s496 = ssub.s32 %s9, 2
      // Predicated region
      $region41: #{spatial_transformer.1} parent=39 // pred_check
        %p497 = pneg %p132
      $region42: #{spatial_transformer.1} parent=39 // pred_check_branch
        %499 = sbr.rel (%p497) target = $region44
      $region43: #{spatial_transformer.1} parent=39 // pred_region
        %s500 = smul.u32 2, %s21
        %p501 = scmp.lt.s32.totalorder %s20, 1
        %s502 = scalar_select %p501, %s20, 1
        %p503 = scmp.lt.s32.totalorder %s500, 1
        %s504 = scalar_select %p503, %s500, 1
        %s505 = smul.addr %s502, 2
        %s506 = sadd.s32 %s504, %s505
        %s507 = scalar_lea.vmem %s3, %s506
      $region44: #{spatial_transformer.1} parent=39 // pred_fallthru
        _
    $region40: #{spatial_transformer.1} parent=5 // pred_fallthru
      _
  $region6: #{spatial_transformer.1} parent=0 // loop_footer
    %s13 = sadd.s32 1, %s9
  $region7: #{spatial_transformer.1} parent=0 // loop_footer_branch
    %8 = sbr.rel target = $region3
  $region8: #{spatial_transformer.1} parent=0 // loop_exit
    _

</llo_original>
